<compile_context>
chip_gen: v7x
topology: tpu7x:2x2x1
jax: 0.10.0
libtpu: 0.0.40
codegen_flags: <defaults>
</compile_context>

<pallas_src>
import jax
import jax.numpy as jnp
from jax.experimental import pallas as pl
from jax.experimental.pallas import tpu as pltpu


def _round_up(x, m):
    return (x + m - 1) // m * m


def _sublane_multiple(dtype):
    # Minimum second-to-last tile dim: 8 (f32), 16 (bf16), 32 (int8/fp8).
    return max(8, 32 // jnp.dtype(dtype).itemsize)


def _head_kernel(cls_ref, w_ref, b_ref, o_ref):
    # cls_ref: (TB, E) in x.dtype, w_ref: (TN, E) [PyTorch (C, E) layout],
    # b_ref:  (1, TN) f32,         o_ref: (TB, TN) in x.dtype.
    a = cls_ref[...]
    w = w_ref[...]
    if a.dtype != w.dtype:                 # static, trace-time decision
        a = a.astype(w.dtype)
    logits = jax.lax.dot_general(
        a, w,
        dimension_numbers=(((1,), (1,)), ((), ())),   # contract E with E -> (TB, TN)
        preferred_element_type=jnp.float32)           # f32 MXU accumulation
    o_ref[...] = (logits + b_ref[...]).astype(o_ref.dtype)


def prepare_head_params(weight, bias, *, param_dtype=None):
    """One-time (init / param-load) preparation of the nn.Linear parameters.

    weight: (C, E) PyTorch layout; bias: (C,).
    Returns (weight_padded, bias_padded_f32) with C padded to a multiple of
    256.  Hoisting the pad here avoids an extra HBM round trip of the (C, E)
    weight on every forward call.  Pass param_dtype=jnp.bfloat16 to halve the
    dominant weight HBM traffic (f32 accumulation is kept in the kernel).
    """
    C, _ = weight.shape
    if param_dtype is not None:
        weight = weight.astype(param_dtype)
    C_pad = _round_up(C, 256)
    if C_pad != C:
        weight = jnp.pad(weight, ((0, C_pad - C), (0, 0)))
    bias_f32 = jnp.pad(bias.astype(jnp.float32), (0, C_pad - C)).reshape(1, C_pad)
    return weight, bias_f32


def classification_head(x, weight_padded, bias_padded, num_classes, *,
                        block_b=128, block_n=512):
    """ViT classification head: fc(x[:, 0]).

    x: (B, S, E); weight_padded: (C_pad, E), bias_padded: (1, C_pad) f32
    (both from prepare_head_params).  Returns (B, num_classes) in x.dtype.
    """
    B, S, E = x.shape
    C_pad = weight_padded.shape[0]

    # Batch tile: dtype-aware sublane multiple; batch tails handled by the grid.
    sub = _sublane_multiple(x.dtype)
    TB = block_b if B >= block_b else _round_up(B, sub)

    # Class tile: 128/256-aligned and always divides C_pad (C_pad % 256 == 0).
    TN = block_n if C_pad % block_n == 0 else 256
    TN = min(TN, C_pad)

    grid = (pl.cdiv(B, TB), C_pad // TN)

    if E % 128 == 0:
        # Fused gather: view x as (B, S*E); the first E lanes of each row are
        # exactly x[:, 0, :], and only those bytes are DMA'd by the BlockSpec.
        x_in = x.reshape(B, S * E)
    else:
        # Fallback: E not lane-aligned -> explicit gather outside the kernel.
        x_in = x[:, 0]
    cls_spec = pl.BlockSpec((TB, E), lambda i, j: (i, 0))   # grid-invariant in j

    out = pl.pallas_call(
        _head_kernel,
        out_shape=jax.ShapeDtypeStruct((B, C_pad), x.dtype),
        grid=grid,
        in_specs=[
            cls_spec,                                     # cls tokens: batch-tiled
            pl.BlockSpec((TN, E), lambda i, j: (j, 0)),   # weight: streamed class tiles
            pl.BlockSpec((1, TN), lambda i, j: (0, j)),   # bias: class-tiled, f32
        ],
        out_specs=pl.BlockSpec((TB, TN), lambda i, j: (i, j)),
        compiler_params=pltpu.CompilerParams(
            dimension_semantics=("parallel", "parallel")),  # both axes independent
    )(x_in, weight_padded, bias_padded)

    return out[:, :num_classes]


def _reference(x, weight, bias):
    return jnp.einsum("be,ce->bc", x[:, 0], weight,
                      precision=jax.lax.Precision.HIGHEST) + bias


if __name__ == "__main__":
    key = jax.random.PRNGKey(0)

    # --- Main check: lane-aligned embed dim (fused cls-token DMA path) -------
    B, S, E, C = 8, 8, 128, 10
    kx, kw, kb, key = jax.random.split(key, 4)
    x = jax.random.normal(kx, (B, S, E), dtype=jnp.float32)
    weight = jax.random.normal(kw, (C, E), dtype=jnp.float32) * 0.02
    bias = jax.random.normal(kb, (C,), dtype=jnp.float32) * 0.02

    w_pad, b_pad = prepare_head_params(weight, bias)      # hoisted: once at init
    out = jax.block_until_ready(classification_head(x, w_pad, b_pad, num_classes=C))

    ref = _reference(x, weight, bias)
    assert out.shape == (B, C)
    assert out.dtype == x.dtype
    assert jnp.allclose(out, ref, atol=1e-3, rtol=1e-3)

    # --- Secondary check: non-128-aligned embed dim (fallback gather path) ---
    B2, S2, E2, C2 = 8, 8, 32, 10
    kx2, kw2, kb2, key = jax.random.split(key, 4)
    x2 = jax.random.normal(kx2, (B2, S2, E2), dtype=jnp.float32)
    weight2 = jax.random.normal(kw2, (C2, E2), dtype=jnp.float32) * 0.02
    bias2 = jax.random.normal(kb2, (C2,), dtype=jnp.float32) * 0.02

    w_pad2, b_pad2 = prepare_head_params(weight2, bias2)
    out2 = jax.block_until_ready(
        classification_head(x2, w_pad2, b_pad2, num_classes=C2))
    ref2 = _reference(x2, weight2, bias2)
    assert out2.shape == (B2, C2)
    assert jnp.allclose(out2, ref2, atol=1e-3, rtol=1e-3)

    print("KERNEL_OK")
</pallas_src>

<mosaic_0001>
module attributes {stable_mosaic.version = 11 : i64} {
  func.func @_head_kernel(%arg0: i32, %arg1: i32, %arg2: memref<8x128xf32, #tpu.memory_space<vmem>>, %arg3: memref<256x128xf32, #tpu.memory_space<vmem>>, %arg4: memref<1x256xf32, #tpu.memory_space<vmem>>, %arg5: memref<8x256xf32, #tpu.memory_space<vmem>>) attributes {dimension_semantics = [#tpu.dimension_semantics<parallel>, #tpu.dimension_semantics<parallel>], iteration_bounds = array<i64: 1, 1>, scalar_prefetch = 0 : i64, scratch_operands = 0 : i64, tpu.core_type = #tpu.core_type<tc>, window_params = [{transform_indices = @transform_0, window_bounds = array<i64: 8, 128>}, {transform_indices = @transform_1, window_bounds = array<i64: 256, 128>}, {transform_indices = @transform_2, window_bounds = array<i64: 1, 256>}, {transform_indices = @transform_3, window_bounds = array<i64: 8, 256>}]} {
    %c0 = arith.constant 0 : index
    %c0_0 = arith.constant 0 : index
    %0 = vector.load %arg2[%c0, %c0_0] : memref<8x128xf32, #tpu.memory_space<vmem>>, vector<8x128xf32>
    %c0_1 = arith.constant 0 : index
    %c0_2 = arith.constant 0 : index
    %1 = vector.load %arg3[%c0_1, %c0_2] : memref<256x128xf32, #tpu.memory_space<vmem>>, vector<256x128xf32>
    %cst = arith.constant dense<0.000000e+00> : vector<8x256xf32>
    %2 = tpu.matmul %0, %1, %cst {dimension_numbers = #tpu.dot_dimension_numbers<[1], [1], [0], [0], [0, 0, 1, 0], [], []>} : vector<8x128xf32>, vector<256x128xf32>, vector<8x256xf32> -> vector<8x256xf32>
    %c0_3 = arith.constant 0 : index
    %c0_4 = arith.constant 0 : index
    %3 = vector.load %arg4[%c0_3, %c0_4] : memref<1x256xf32, #tpu.memory_space<vmem>>, vector<1x256xf32>
    %4 = vector.broadcast %3 : vector<1x256xf32> to vector<8x256xf32>
    %5 = arith.addf %2, %4 : vector<8x256xf32>
    %c0_5 = arith.constant 0 : index
    %c0_6 = arith.constant 0 : index
    %6 = vector.load %arg5[%c0_5, %c0_6] : memref<8x256xf32, #tpu.memory_space<vmem>>, vector<8x256xf32>
    tpu.vector_store %arg5[%c0_5, %c0_6], %5 {strides = array<i32>} : memref<8x256xf32, #tpu.memory_space<vmem>>, vector<8x256xf32>,
    return
  }
  func.func @transform_0(%arg0: i32, %arg1: i32) -> (i32, i32) {
    %c0_i32 = arith.constant 0 : i32
    %c0_i32_0 = arith.constant 0 : i32
    return %arg0, %c0_i32 : i32, i32
  }
  func.func @transform_1(%arg0: i32, %arg1: i32) -> (i32, i32) {
    %c0_i32 = arith.constant 0 : i32
    %c0_i32_0 = arith.constant 0 : i32
    return %arg1, %c0_i32 : i32, i32
  }
  func.func @transform_2(%arg0: i32, %arg1: i32) -> (i32, i32) {
    %c0_i32 = arith.constant 0 : i32
    %c0_i32_0 = arith.constant 0 : i32
    return %c0_i32, %arg1 : i32, i32
  }
  func.func @transform_3(%arg0: i32, %arg1: i32) -> (i32, i32) {
    %c0_i32 = arith.constant 0 : i32
    return %arg0, %arg1 : i32, i32
  }
}

</mosaic_0001>

<llo_original>
// kernel: tpu_custom_call.1
$region0: #{tpu_custom_call.1}
  #allocation0 [shape = 'u32[]', space=smem, size = 0x4, offset = 0x4, fixed_abs, tag = 'smem constant byte address 0x4 - core index']
  #allocation1 [shape = 'u32[144,128]{1,0:T(1,128)}', space=vmem, size = 0x12000, scoped, tag = 'internal scratch']
  %s0 = inlined_call_operand.hbm [shape: f32[8,1024], index: 0, kind: input, shape index: {}]
  %s1 = inlined_call_operand.hbm [shape: f32[256,128], index: 1, kind: input, shape index: {}]
  %s2 = inlined_call_operand.vmem [shape: f32[1,256], index: 2, kind: input, shape index: {}]
  %s3 = inlined_call_operand.hbm [shape: f32[8,256], index: 3, kind: output, shape index: {}]
  %s4 = sld [smem:[#allocation0]]
  $region30: #{tpu_custom_call.1} parent=0
    _
  %s6 = ssub.s32 1, %s4
  %s7 = scalar_select 0, %s6, %s4
  $region1: #{tpu_custom_call.1} parent=0
    #allocation2 [shape = 'u8[4096]{0}', space=vmem, size = 0x1000, scoped, tag = 'input window, operand 0, single buffered']
    #allocation3 [shape = 's32[1]{0}', space=sflag, size = 0x4, scoped, tag = 'scoped memory for tpu_custom_call.1']
    #allocation4 [shape = 's32[1]{0}', space=sflag, size = 0x4, scoped, tag = 'scoped memory for tpu_custom_call.1']
    #allocation5 [shape = 'u8[131072]{0}', space=vmem, size = 0x20000, scoped, tag = 'input window, operand 1, single buffered']
    #allocation6 [shape = 's32[1]{0}', space=sflag, size = 0x4, scoped, tag = 'scoped memory for tpu_custom_call.1']
    #allocation7 [shape = 'u8[8192]{0}', space=vmem, size = 0x2000, scoped, tag = 'output window, operand 0, single buffered']
    %8 = vsyncpa [#allocation3], 0
    %9 = vsyncpa [#allocation6], 0
    %10 = vsyncpa [#allocation4], 0
    // Predicated region
    $region2: #{tpu_custom_call.1} parent=1 // pred_check
      _
    $region3: #{tpu_custom_call.1} parent=1 // pred_check_branch
      %12 = sbr.rel (0) target = $region5
    $region4: #{tpu_custom_call.1} parent=1 // pred_region
      %s14 = ssub.s32 128, 128
      %15 = vsyncadd [#allocation3], %s14
      %s17 = sshll.u32 [#allocation2], 4
      %s18 = int_to_ptr.vmem [resolvable:$true] %s17
      %20 = dma.hbm_to_vmem [thread:$0]  %s0, 128, %s18, [#allocation3]
    $region5: #{tpu_custom_call.1} parent=1 // pred_fallthru
      _
    // Predicated region
    $region6: #{tpu_custom_call.1} parent=1 // pred_check
      _
    $region7: #{tpu_custom_call.1} parent=1 // pred_check_branch
      %22 = sbr.rel (0) target = $region9
    $region8: #{tpu_custom_call.1} parent=1 // pred_region
      %s24 = ssub.s32 4096, 4096
      %25 = vsyncadd [#allocation6], %s24
      %s26 = sshll.u32 [#allocation5], 4
      %s27 = int_to_ptr.vmem [resolvable:$true] %s26
      %32 = dma.hbm_to_vmem [thread:$0]  %s1, 4096, %s27, [#allocation6], 128, 128, 8
    $region9: #{tpu_custom_call.1} parent=1 // pred_fallthru
      _
    // Predicated region
    $region10: #{tpu_custom_call.1} parent=1 // pred_check
      _
    $region11: #{tpu_custom_call.1} parent=1 // pred_check_branch
      %34 = sbr.rel (0) target = $region13
    $region12: #{tpu_custom_call.1} parent=1 // pred_region
      _
    $region13: #{tpu_custom_call.1} parent=1 // pred_fallthru
      _
    // Predicated region
    $region14: #{tpu_custom_call.1} parent=1 // pred_check
      _
    $region15: #{tpu_custom_call.1} parent=1 // pred_check_branch
      %36 = sbr.rel (0) target = $region17
    $region16: #{tpu_custom_call.1} parent=1 // pred_region
      %37 = dma.done [#allocation3], 128
    $region17: #{tpu_custom_call.1} parent=1 // pred_fallthru
      _
    // Predicated region
    $region18: #{tpu_custom_call.1} parent=1 // pred_check
      _
    $region19: #{tpu_custom_call.1} parent=1 // pred_check_branch
      %39 = sbr.rel (0) target = $region21
    $region20: #{tpu_custom_call.1} parent=1 // pred_region
      %40 = dma.done [#allocation6], 4096
    $region21: #{tpu_custom_call.1} parent=1 // pred_fallthru
      _
    %v41 = vld [vmem:[#allocation2] sm:$0xff]
    %v42 = vld [vmem:[#allocation5] sm:$0xff]
    %v43 = vld [vmem:[#allocation5 + $0x8] sm:$0xff]
    %v44 = vld [vmem:[#allocation5 + $0x10] sm:$0xff]
    %v45 = vld [vmem:[#allocation5 + $0x18] sm:$0xff]
    %v46 = vld [vmem:[#allocation5 + $0x20] sm:$0xff]
    %v47 = vld [vmem:[#allocation5 + $0x28] sm:$0xff]
    %v48 = vld [vmem:[#allocation5 + $0x30] sm:$0xff]
    %v49 = vld [vmem:[#allocation5 + $0x38] sm:$0xff]
    %v50 = vld [vmem:[#allocation5 + $0x40] sm:$0xff]
    %v51 = vld [vmem:[#allocation5 + $0x48] sm:$0xff]
    %v52 = vld [vmem:[#allocation5 + $0x50] sm:$0xff]
    %v53 = vld [vmem:[#allocation5 + $0x58] sm:$0xff]
    %v54 = vld [vmem:[#allocation5 + $0x60] sm:$0xff]
    %v55 = vld [vmem:[#allocation5 + $0x68] sm:$0xff]
    %v56 = vld [vmem:[#allocation5 + $0x70] sm:$0xff]
    %v57 = vld [vmem:[#allocation5 + $0x78] sm:$0xff]
    %v58 = vld [vmem:[#allocation5 + $0x80] sm:$0xff]
    %v59 = vld [vmem:[#allocation5 + $0x88] sm:$0xff]
    %v60 = vld [vmem:[#allocation5 + $0x90] sm:$0xff]
    %v61 = vld [vmem:[#allocation5 + $0x98] sm:$0xff]
    %v62 = vld [vmem:[#allocation5 + $0xa0] sm:$0xff]
    %v63 = vld [vmem:[#allocation5 + $0xa8] sm:$0xff]
    %v64 = vld [vmem:[#allocation5 + $0xb0] sm:$0xff]
    %v65 = vld [vmem:[#allocation5 + $0xb8] sm:$0xff]
    %v66 = vld [vmem:[#allocation5 + $0xc0] sm:$0xff]
    %v67 = vld [vmem:[#allocation5 + $0xc8] sm:$0xff]
    %v68 = vld [vmem:[#allocation5 + $0xd0] sm:$0xff]
    %v69 = vld [vmem:[#allocation5 + $0xd8] sm:$0xff]
    %v70 = vld [vmem:[#allocation5 + $0xe0] sm:$0xff]
    %v71 = vld [vmem:[#allocation5 + $0xe8] sm:$0xff]
    %v72 = vld [vmem:[#allocation5 + $0xf0] sm:$0xff]
    %v73 = vld [vmem:[#allocation5 + $0xf8] sm:$0xff]
    %v74 = vld [vmem:[%s2] sm:$0x3]
    %v76 = vlaneseq
    %v77 = vshrl.u32 %v76, 7
    %v78 = vsub.s32 0, %v77
    %v79 = vrot.slane %v74, %v78
    %v80 = vlaneseq
    %v81 = vshrl.u32 %v80, 7
    %v82 = vsub.s32 1, %v81
    %v83 = vrot.slane %v74, %v82
    %86 = vmatprep.subr.mxu0 0.0
    %87 = vmatpush1.xpose.msra.mxu0 %v42
    %88 = vmatprep.subr.mxu0 0.0
    %89 = vmatpush1.xpose.msra.mxu0 %v43
    %90 = vmatprep.subr.mxu0 0.0
    %91 = vmatpush1.xpose.msra.mxu0 %v44
    %92 = vmatprep.subr.mxu0 0.0
    %93 = vmatpush1.xpose.msra.mxu0 %v45
    %94 = vmatprep.subr.mxu0 0.0
    %95 = vmatpush1.xpose.msra.mxu0 %v46
    %96 = vmatprep.subr.mxu0 0.0
    %97 = vmatpush1.xpose.msra.mxu0 %v47
    %98 = vmatprep.subr.mxu0 0.0
    %99 = vmatpush1.xpose.msra.mxu0 %v48
    %100 = vmatprep.subr.mxu0 0.0
    %101 = vmatpush1.xpose.msra.mxu0 %v49
    %102 = vmatprep.subr.mxu0 0.0
    %103 = vmatpush1.xpose.msra.mxu0 %v50
    %104 = vmatprep.subr.mxu0 0.0
    %105 = vmatpush1.xpose.msra.mxu0 %v51
    %106 = vmatprep.subr.mxu0 0.0
    %107 = vmatpush1.xpose.msra.mxu0 %v52
    %108 = vmatprep.subr.mxu0 0.0
    %109 = vmatpush1.xpose.msra.mxu0 %v53
    %110 = vmatprep.subr.mxu0 0.0
    %111 = vmatpush1.xpose.msra.mxu0 %v54
    %112 = vmatprep.subr.mxu0 0.0
    %113 = vmatpush1.xpose.msra.mxu0 %v55
    %114 = vmatprep.subr.mxu0 0.0
    %115 = vmatpush1.xpose.msra.mxu0 %v56
    %116 = vmatprep.subr.mxu0 0.0
    %117 = vmatpush1.xpose.msra.mxu0 %v57
    %118 = vmatprep.subr.mxu0 0.0
    %119 = vmatpush1.xpose.msra.mxu0 %v58
    %120 = vmatprep.subr.mxu0 0.0
    %121 = vmatpush1.xpose.msra.mxu0 %v59
    %122 = vmatprep.subr.mxu0 0.0
    %123 = vmatpush1.xpose.msra.mxu0 %v60
    %124 = vmatprep.subr.mxu0 0.0
    %125 = vmatpush1.xpose.msra.mxu0 %v61
    %126 = vmatprep.subr.mxu0 0.0
    %127 = vmatpush1.xpose.msra.mxu0 %v62
    %128 = vmatprep.subr.mxu0 0.0
    %129 = vmatpush1.xpose.msra.mxu0 %v63
    %130 = vmatprep.subr.mxu0 0.0
    %131 = vmatpush1.xpose.msra.mxu0 %v64
    %132 = vmatprep.subr.mxu0 0.0
    %133 = vmatpush1.xpose.msra.mxu0 %v65
    %134 = vmatprep.subr.mxu0 0.0
    %135 = vmatpush1.xpose.msra.mxu0 %v66
    %136 = vmatprep.subr.mxu0 0.0
    %137 = vmatpush1.xpose.msra.mxu0 %v67
    %138 = vmatprep.subr.mxu0 0.0
    %139 = vmatpush1.xpose.msra.mxu0 %v68
    %140 = vmatprep.subr.mxu0 0.0
    %141 = vmatpush1.xpose.msra.mxu0 %v69
    %142 = vmatprep.subr.mxu0 0.0
    %143 = vmatpush1.xpose.msra.mxu0 %v70
    %144 = vmatprep.subr.mxu0 0.0
    %145 = vmatpush1.xpose.msra.mxu0 %v71
    %146 = vmatprep.subr.mxu0 0.0
    %147 = vmatpush1.xpose.msra.mxu0 %v72
    %148 = vmatprep.subr.mxu0 0.0
    %149 = vmatpush1.xpose.msra.mxu0 %v73
    %150 = vmatprep.mubr.f32.mxu0 0.0
    %151 = vmatmul.mubr.f32.gmra.mrb[0].mxu0 %v41
    %v152 = vpop.f32.mrb[0].mxu0
    %v153 = vadd.f32 %v79, %v152
    %v154 = vpop.f32.mrb[0].mxu0
    %v155 = vadd.f32 %v83, %v154
    %156 = vdwg.mxu0
    %157 = vst [vmem:[#allocation7] sm:$0xff] %v153
    %158 = vst [vmem:[#allocation7 + $0x8] sm:$0xff] %v155
    // Predicated region
    $region22: #{tpu_custom_call.1} parent=1 // pred_check
      _
    $region23: #{tpu_custom_call.1} parent=1 // pred_check_branch
      %160 = sbr.rel (0) target = $region25
    $region24: #{tpu_custom_call.1} parent=1 // pred_region
      %s162 = ssub.s32 256, 256
      %163 = vsyncadd [#allocation4], %s162
      %s165 = sshll.u32 [#allocation7], 4
      %s166 = int_to_ptr.vmem [resolvable:$true] %s165
      %168 = dma.vmem_to_hbm [thread:$0]  %s166, 256, %s3, [#allocation4]
    $region25: #{tpu_custom_call.1} parent=1 // pred_fallthru
      _
    // Predicated region
    $region26: #{tpu_custom_call.1} parent=1 // pred_check
      _
    $region27: #{tpu_custom_call.1} parent=1 // pred_check_branch
      %170 = sbr.rel (0) target = $region29
    $region28: #{tpu_custom_call.1} parent=1 // pred_region
      %171 = dma.done [#allocation4], 256
    $region29: #{tpu_custom_call.1} parent=1 // pred_fallthru
      _
    %172 = vsyncpa [#allocation3], 1
    %173 = vsyncpa [#allocation6], 1
    %174 = vsyncpa [#allocation4], 1

</llo_original>
